<compile_context>
chip_gen: v6e
topology: v6e:2x2x1
jax: 0.10.0
libtpu: 0.0.40
codegen_flags: <defaults>
</compile_context>

<pallas_src>
import jax
import jax.numpy as jnp
from jax.experimental import pallas as pl
from jax.experimental.pallas import tpu as pltpu


_LANE = 128
_VMEM_LIMIT = 32 * 1024 * 1024          # safe scoped-VMEM request on v5e/v6e/v7x
_FUSED_SLAB_LIMIT = 6 * 1024 * 1024     # per-batch slab limit for the fused fast path
_TARGET_TILE_BYTES = 4 * 1024 * 1024    # spatial tile target for the two-pass path


def _round_up(x, m):
    return (x + m - 1) // m * m


def _se_gate(pooled, w1k, w2k):
    """SE bottleneck: sigmoid(W2 @ relu(W1 @ pooled)), all in f32 on the VPU.

    pooled: (1, C, 1) f32
    w1k:    (1, C, mid) with w1k[0, c, j] = W1[j, c]
    w2k:    (1, C, mid) with w2k[0, c, j] = W2[c, j]
    returns (1, C, 1) f32 gate
    """
    # h_j = relu(sum_c pooled_c * W1[j, c])     (cross-sublane reduce)
    h = jnp.sum(pooled * w1k.astype(jnp.float32), axis=1, keepdims=True)    # (1, 1, mid)
    h = jnp.maximum(h, 0.0)
    # z_c = sum_j h_j * W2[c, j]                (cross-lane reduce)
    z = jnp.sum(h * w2k.astype(jnp.float32), axis=-1, keepdims=True)        # (1, C, 1)
    return 1.0 / (1.0 + jnp.exp(-z))                                        # sigmoid


def _make_fused_kernel(inv_s):
    """Single-pass pool + FC + scale; the whole per-batch slab is resident in VMEM."""

    def _fused_kernel(x_ref, w1_ref, w2_ref, o_ref):
        # x_ref/o_ref: (1, C, S); w1_ref/w2_ref: (1, C, mid)
        x = x_ref[...]
        pooled = jnp.sum(x, axis=-1, keepdims=True, dtype=jnp.float32) * inv_s  # (1, C, 1)
        gate = _se_gate(pooled, w1_ref[...], w2_ref[...])                        # (1, C, 1)
        o_ref[...] = (x * gate.astype(x.dtype)).astype(o_ref.dtype)

    return _fused_kernel


def _make_pool_gate_kernel(inv_s, s_total, ts, needs_mask):
    """Global-avg-pool over spatial tiles + fused SE bottleneck FC on the last tile."""

    def _pool_gate_kernel(x_ref, w1_ref, w2_ref, g_ref):
        # x_ref:  (1, C, ts)   spatial tile (lanes = spatial)
        # g_ref:  (1, C, 1)    f32; running sum, overwritten with the gate at the end
        s = pl.program_id(1)

        @pl.when(s == 0)
        def _():
            g_ref[...] = jnp.zeros_like(g_ref)

        x = x_ref[...]
        if needs_mask:
            # ragged last tile: zero lanes beyond the true spatial extent
            lane = jax.lax.broadcasted_iota(jnp.int32, x.shape, dimension=2)
            x = jnp.where(s * ts + lane < s_total, x, jnp.zeros((), x.dtype))
        g_ref[...] += jnp.sum(x, axis=-1, keepdims=True, dtype=jnp.float32)

        @pl.when(s == pl.num_programs(1) - 1)
        def _():
            g_ref[...] = _se_gate(g_ref[...] * inv_s, w1_ref[...], w2_ref[...])

    return _pool_gate_kernel


def _scale_kernel(x_ref, g_ref, o_ref):
    # x_ref: (1, C, ts), g_ref: (1, C, 1) f32, o_ref: (1, C, ts)
    gate = g_ref[...].astype(x_ref.dtype)
    o_ref[...] = (x_ref[...] * gate).astype(o_ref.dtype)


def se_layer(x, w1, w2, *,
             fused_slab_limit=_FUSED_SLAB_LIMIT,
             target_tile_bytes=_TARGET_TILE_BYTES,
             vmem_limit_bytes=_VMEM_LIMIT):
    """x: (B, C, H, W); w1: (C//r, C); w2: (C, C//r). Returns same shape/dtype as x."""
    B, C, H, W = x.shape
    mid = w1.shape[0]
    assert w1.shape == (mid, C) and w2.shape == (C, mid)

    S = H * W
    itemsize = int(jnp.dtype(x.dtype).itemsize)
    x3 = x.reshape(B, C, S)                      # zero-copy for contiguous NCHW
    inv_s = 1.0 / float(S)

    # weights rearranged so the FC is a natural broadcast+reduce in the
    # (sublane=C, lane=mid) layout used inside the kernels
    w1_k = jnp.transpose(w1).reshape(1, C, mid)  # [0, c, j] = W1[j, c]
    w2_k = w2.reshape(1, C, mid)                 # [0, c, j] = W2[c, j]

    slab_bytes = C * S * itemsize

    # ---------------- fast path: fused single pass over x ----------------
    if slab_bytes <= fused_slab_limit:
        out3 = pl.pallas_call(
            _make_fused_kernel(inv_s),
            out_shape=jax.ShapeDtypeStruct((B, C, S), x.dtype),
            grid_spec=pltpu.PrefetchScalarGridSpec(
                num_scalar_prefetch=0,
                grid=(B,),
                in_specs=[
                    pl.BlockSpec((1, C, S), lambda b: (b, 0, 0)),
                    pl.BlockSpec((1, C, mid), lambda b: (0, 0, 0)),
                    pl.BlockSpec((1, C, mid), lambda b: (0, 0, 0)),
                ],
                out_specs=pl.BlockSpec((1, C, S), lambda b: (b, 0, 0)),
            ),
            compiler_params=pltpu.CompilerParams(
                dimension_semantics=("parallel",),
                vmem_limit_bytes=vmem_limit_bytes),
            cost_estimate=pl.CostEstimate(
                flops=int(2 * B * C * S + 4 * B * C * mid),
                transcendentals=int(B * C),
                bytes_accessed=int(2 * B * C * S * itemsize)),
        )(x3, w1_k, w2_k)
        return out3.reshape(B, C, H, W)

    # ---------------- fallback: two streaming passes (pool+gate, scale) ----------------
    max_ts = max(_LANE, (target_tile_bytes // max(1, C * itemsize)) // _LANE * _LANE)
    if S <= max_ts:
        ts = S                                   # single full-extent spatial tile
    else:
        ts = max_ts                              # 128-aligned tile; last tile may be ragged
    n_s = pl.cdiv(S, ts)
    needs_mask = (S % ts) != 0

    gate = pl.pallas_call(
        _make_pool_gate_kernel(inv_s, S, ts, needs_mask),
        out_shape=jax.ShapeDtypeStruct((B, C, 1), jnp.float32),
        grid_spec=pltpu.PrefetchScalarGridSpec(
            num_scalar_prefetch=0,
            grid=(B, n_s),
            in_specs=[
                pl.BlockSpec((1, C, ts), lambda b, s: (b, 0, s)),
                pl.BlockSpec((1, C, mid), lambda b, s: (0, 0, 0)),
                pl.BlockSpec((1, C, mid), lambda b, s: (0, 0, 0)),
            ],
            out_specs=pl.BlockSpec((1, C, 1), lambda b, s: (b, 0, 0)),
        ),
        compiler_params=pltpu.CompilerParams(
            dimension_semantics=("parallel", "arbitrary"),
            vmem_limit_bytes=vmem_limit_bytes),
        cost_estimate=pl.CostEstimate(
            flops=int(B * C * S + 4 * B * C * mid),
            transcendentals=int(B * C),
            bytes_accessed=int(B * C * S * itemsize + B * C * 4)),
    )(x3, w1_k, w2_k)

    # TODO(synk): on v7x with B==1 the pool pass above uses only one of the two
    # TensorCores; a (B, 2, n_s//2) core-split with partial sums would recover it.

    out3 = pl.pallas_call(
        _scale_kernel,
        out_shape=jax.ShapeDtypeStruct((B, C, S), x.dtype),
        grid_spec=pltpu.PrefetchScalarGridSpec(
            num_scalar_prefetch=0,
            grid=(B, n_s),
            in_specs=[
                pl.BlockSpec((1, C, ts), lambda b, s: (b, 0, s)),
                pl.BlockSpec((1, C, 1), lambda b, s: (b, 0, 0)),
            ],
            out_specs=pl.BlockSpec((1, C, ts), lambda b, s: (b, 0, s)),
        ),
        compiler_params=pltpu.CompilerParams(
            dimension_semantics=("parallel", "parallel"),
            vmem_limit_bytes=vmem_limit_bytes),
        cost_estimate=pl.CostEstimate(
            flops=int(B * C * S),
            transcendentals=0,
            bytes_accessed=int(2 * B * C * S * itemsize + B * C * 4)),
    )(x3, gate)

    return out3.reshape(B, C, H, W)


def _reference(x, w1, w2):
    # pure-JAX reference mirroring the PyTorch SELayer forward (f32-exact matmuls)
    y = jnp.mean(x.astype(jnp.float32), axis=(2, 3))                        # (B, C)
    h = jnp.maximum(jnp.einsum("bc,mc->bm", y, w1.astype(jnp.float32),
                               precision=jax.lax.Precision.HIGHEST), 0.0)   # (B, mid)
    g = jax.nn.sigmoid(jnp.einsum("bm,cm->bc", h, w2.astype(jnp.float32),
                                  precision=jax.lax.Precision.HIGHEST))     # (B, C)
    return (x.astype(jnp.float32) * g[:, :, None, None]).astype(x.dtype)


if __name__ == "__main__":
    key = jax.random.PRNGKey(0)
    B, C = 2, 32
    reduction = 16
    mid = C // reduction                                   # 2

    k1, k2, k3, k4 = jax.random.split(key, 4)
    # bias-free Linear weights (torch layout): w1: (C//r, C), w2: (C, C//r)
    w1 = jax.random.normal(k2, (mid, C), dtype=jnp.float32) / jnp.sqrt(C)
    w2 = jax.random.normal(k3, (C, mid), dtype=jnp.float32) / jnp.sqrt(mid)

    # 1) fused single-pass fast path (default thresholds)
    x = jax.random.normal(k1, (B, C, 16, 16), dtype=jnp.float32)
    y = jax.block_until_ready(se_layer(x, w1, w2))
    assert y.shape == x.shape and y.dtype == x.dtype
    assert jnp.allclose(y, _reference(x, w1, w2), atol=2e-5, rtol=2e-5)

    # 2) two-pass streaming path, 128-aligned spatial tiles (forced via thresholds)
    y2 = jax.block_until_ready(
        se_layer(x, w1, w2, fused_slab_limit=0, target_tile_bytes=1))
    assert jnp.allclose(y2, _reference(x, w1, w2), atol=2e-5, rtol=2e-5)

    # 3) two-pass streaming path with a ragged (masked) last spatial tile
    x3 = jax.random.normal(k4, (B, C, 13, 13), dtype=jnp.float32)    # S = 169
    y3 = jax.block_until_ready(
        se_layer(x3, w1, w2, fused_slab_limit=0, target_tile_bytes=1))
    assert y3.shape == x3.shape and y3.dtype == x3.dtype
    assert jnp.allclose(y3, _reference(x3, w1, w2), atol=2e-5, rtol=2e-5)

    print("KERNEL_OK")
</pallas_src>

<mosaic_0001>
module attributes {stable_mosaic.version = 11 : i64} {
  func.func @_fused_kernel(%arg0: i32, %arg1: memref<1x32x256xf32, #tpu.memory_space<vmem>>, %arg2: memref<1x32x2xf32, #tpu.memory_space<vmem>>, %arg3: memref<1x32x2xf32, #tpu.memory_space<vmem>>, %arg4: memref<1x32x256xf32, #tpu.memory_space<vmem>>) attributes {dimension_semantics = [#tpu.dimension_semantics<parallel>], iteration_bounds = array<i64: 2>, scalar_prefetch = 0 : i64, scratch_operands = 0 : i64, tpu.core_type = #tpu.core_type<tc>, window_params = [{transform_indices = @transform_0, window_bounds = array<i64: 1, 32, 256>}, {pipeline_mode = #tpu.pipeline_mode<synchronous>, transform_indices = @transform_1, window_bounds = array<i64: 1, 32, 2>}, {pipeline_mode = #tpu.pipeline_mode<synchronous>, transform_indices = @transform_2, window_bounds = array<i64: 1, 32, 2>}, {transform_indices = @transform_3, window_bounds = array<i64: 1, 32, 256>}]} {
    %c0 = arith.constant 0 : index
    %c0_0 = arith.constant 0 : index
    %c0_1 = arith.constant 0 : index
    %0 = vector.load %arg1[%c0, %c0_0, %c0_1] : memref<1x32x256xf32, #tpu.memory_space<vmem>>, vector<1x32x256xf32>
    %cst = arith.constant dense<0.000000e+00> : vector<1x32xf32>
    %1 = vector.multi_reduction <add>, %0, %cst [2] : vector<1x32x256xf32> to vector<1x32xf32>
    %2 = vector.shape_cast %1 : vector<1x32xf32> to vector<1x32x1xf32>
    %cst_2 = arith.constant 3.906250e-03 : f32
    %3 = vector.broadcast %cst_2 : f32 to vector<1x32x1xf32>
    %4 = arith.mulf %2, %3 : vector<1x32x1xf32>
    %c0_3 = arith.constant 0 : index
    %c0_4 = arith.constant 0 : index
    %c0_5 = arith.constant 0 : index
    %5 = vector.load %arg2[%c0_3, %c0_4, %c0_5] : memref<1x32x2xf32, #tpu.memory_space<vmem>>, vector<1x32x2xf32>
    %c0_6 = arith.constant 0 : index
    %c0_7 = arith.constant 0 : index
    %c0_8 = arith.constant 0 : index
    %6 = vector.load %arg3[%c0_6, %c0_7, %c0_8] : memref<1x32x2xf32, #tpu.memory_space<vmem>>, vector<1x32x2xf32>
    %7 = vector.broadcast %4 : vector<1x32x1xf32> to vector<1x32x2xf32>
    %8 = arith.mulf %7, %5 : vector<1x32x2xf32>
    %cst_9 = arith.constant dense<0.000000e+00> : vector<1x2xf32>
    %9 = vector.multi_reduction <add>, %8, %cst_9 [1] : vector<1x32x2xf32> to vector<1x2xf32>
    %10 = vector.shape_cast %9 : vector<1x2xf32> to vector<1x1x2xf32>
    %cst_10 = arith.constant 0.000000e+00 : f32
    %11 = vector.broadcast %cst_10 : f32 to vector<1x1x2xf32>
    %12 = arith.maximumf %10, %11 : vector<1x1x2xf32>
    %13 = vector.broadcast %12 : vector<1x1x2xf32> to vector<1x32x2xf32>
    %14 = arith.mulf %13, %6 : vector<1x32x2xf32>
    %cst_11 = arith.constant dense<0.000000e+00> : vector<1x32xf32>
    %15 = vector.multi_reduction <add>, %14, %cst_11 [2] : vector<1x32x2xf32> to vector<1x32xf32>
    %16 = vector.shape_cast %15 : vector<1x32xf32> to vector<1x32x1xf32>
    %cst_12 = arith.constant 0.000000e+00 : f32
    %17 = vector.broadcast %cst_12 : f32 to vector<1x32x1xf32>
    %18 = arith.subf %17, %16 : vector<1x32x1xf32>
    %19 = math.exp %18 : vector<1x32x1xf32>
    %cst_13 = arith.constant 1.000000e+00 : f32
    %20 = vector.broadcast %cst_13 : f32 to vector<1x32x1xf32>
    %21 = arith.addf %20, %19 : vector<1x32x1xf32>
    %cst_14 = arith.constant 1.000000e+00 : f32
    %22 = vector.broadcast %cst_14 : f32 to vector<1x32x1xf32>
    %23 = arith.divf %22, %21 : vector<1x32x1xf32>
    %24 = vector.broadcast %23 : vector<1x32x1xf32> to vector<1x32x256xf32>
    %25 = arith.mulf %0, %24 : vector<1x32x256xf32>
    %c0_15 = arith.constant 0 : index
    %c0_16 = arith.constant 0 : index
    %c0_17 = arith.constant 0 : index
    %26 = vector.load %arg4[%c0_15, %c0_16, %c0_17] : memref<1x32x256xf32, #tpu.memory_space<vmem>>, vector<1x32x256xf32>
    tpu.vector_store %arg4[%c0_15, %c0_16, %c0_17], %25 {strides = array<i32>} : memref<1x32x256xf32, #tpu.memory_space<vmem>>, vector<1x32x256xf32>,
    return
  }
  func.func @transform_0(%arg0: i32) -> (i32, i32, i32) {
    %c0_i32 = arith.constant 0 : i32
    %c0_i32_0 = arith.constant 0 : i32
    %c0_i32_1 = arith.constant 0 : i32
    return %arg0, %c0_i32, %c0_i32_0 : i32, i32, i32
  }
  func.func @transform_1(%arg0: i32) -> (i32, i32, i32) {
    %c0_i32 = arith.constant 0 : i32
    %c0_i32_0 = arith.constant 0 : i32
    %c0_i32_1 = arith.constant 0 : i32
    %c0_i32_2 = arith.constant 0 : i32
    return %c0_i32, %c0_i32_0, %c0_i32_1 : i32, i32, i32
  }
  func.func @transform_2(%arg0: i32) -> (i32, i32, i32) {
    %c0_i32 = arith.constant 0 : i32
    %c0_i32_0 = arith.constant 0 : i32
    %c0_i32_1 = arith.constant 0 : i32
    %c0_i32_2 = arith.constant 0 : i32
    return %c0_i32, %c0_i32_0, %c0_i32_1 : i32, i32, i32
  }
  func.func @transform_3(%arg0: i32) -> (i32, i32, i32) {
    %c0_i32 = arith.constant 0 : i32
    %c0_i32_0 = arith.constant 0 : i32
    %c0_i32_1 = arith.constant 0 : i32
    return %arg0, %c0_i32, %c0_i32_0 : i32, i32, i32
  }
}

</mosaic_0001>

<llo_original>
// kernel: tpu_custom_call.1
$region0: #{tpu_custom_call.1}
  #allocation0 [shape = 'u32[]', space=smem, size = 0x4, offset = 0x4, fixed_abs, tag = 'smem constant byte address 0x4 - core index']
  #allocation1 [shape = 'u32[144,128]{1,0:T(1,128)}', space=vmem, size = 0x12000, scoped, tag = 'internal scratch']
  %s0 = inlined_call_operand.hbm [shape: f32[2,32,256], index: 0, kind: input, shape index: {}]
  %s1 = inlined_call_operand.vmem [shape: f32[1,32,2], index: 1, kind: input, shape index: {}]
  %s2 = inlined_call_operand.vmem [shape: f32[1,32,2], index: 2, kind: input, shape index: {}]
  %s3 = inlined_call_operand.hbm [shape: f32[2,32,256], index: 3, kind: output, shape index: {}]
  %s4 = sld [smem:[#allocation0]]
  $region49: #{tpu_custom_call.1} parent=0
    _
  %s6 = ssub.s32 1, %s4
  %s7 = scalar_select 0, %s6, %s4
  $region1: #{tpu_custom_call.1} parent=0
    #allocation2 [shape = 'u8[65536]{0}', space=vmem, size = 0x10000, scoped, tag = 'input window, operand 0']
    #allocation3 [shape = 's32[2]{0}', space=sflag, size = 0x8, scoped, tag = 'scoped memory for tpu_custom_call.1']
    #allocation4 [shape = 's32[2]{0}', space=sflag, size = 0x8, scoped, tag = 'scoped memory for tpu_custom_call.1']
    #allocation5 [shape = 'u8[65536]{0}', space=vmem, size = 0x10000, scoped, tag = 'output window, operand 0']
    %8 = vsyncpa [#allocation3], 0
    %s9 = scalar_lea.sflag [#allocation3], 1
    %10 = vsyncpa %s9, 0
    %11 = vsyncpa [#allocation4], 0
    %s12 = scalar_lea.sflag [#allocation4], 1
    %13 = vsyncpa %s12, 0
    loop: start=0, step=1, limit=4
    $region2: #{tpu_custom_call.1} parent=1 // loop_pre_header
      _
    $region3: #{tpu_custom_call.1} parent=1 // loop_header
      %s15 = sphi 0, %s19
      %p16 = scmp.ge.s32.totalorder %s15, 4
      %s25 = sphi 0, %s27
      %s28 = sphi 0, %s25
      %s29 = sphi 0, %s28
      %s45 = sphi 0, %s29
      %s49 = sphi 0, %s49
      %s51 = sphi 0, %s49
      %s52 = sphi 0, %s51
      %s66 = sphi 0, %s52
      %s70 = sphi 0, %s70
      %s72 = sphi 0, %s70
      %s73 = sphi 0, %s72
      %s87 = sphi 0, %s73
      %s93 = sphi 0, %s95
      %s96 = sphi 0, %s93
      %s97 = sphi 0, %s96
      %s113 = sphi 0, %s97
    $region4: #{tpu_custom_call.1} parent=1 // loop_header_branch
      %18 = sbr.rel (%p16) target = $region8
    $region5: #{tpu_custom_call.1} parent=1 // loop_body
      %s20 = ssub.s32 %s15, 1
      %s21 = ssub.s32 %s15, 2
      %s22 = sadd.s32 %s15, 1
      %s23 = ssub.s32 %s15, %s22
      %p24 = scmp.eq.s32.totalorder %s23, 0
      %s26 = sadd.s32 %s25, 1
      %s27 = scalar_select %p24, %s25, %s26
      %p30 = pneg %p24
      %p31 = scmp.eq.s32.totalorder %s15, 1
      %p32 = por %p30, %p31
      %p33 = scmp.ne.s32.totalorder %s25, %s28
      %p34 = scmp.eq.s32.totalorder %s15, 0
      %p35 = por %p33, %p34
      %p36 = scmp.ne.s32.totalorder %s25, %s28
      %p37 = scmp.eq.s32.totalorder %s20, 1
      %p38 = por %p36, %p37
      %p39 = scmp.ne.s32.totalorder %s28, %s29
      %p40 = scmp.eq.s32.totalorder %s20, 0
      %p41 = por %p39, %p40
      %p42 = scmp.ne.s32.totalorder %s28, %s29
      %p43 = scmp.eq.s32.totalorder %s21, 1
      %p44 = por %p42, %p43
      %p46 = scmp.ne.s32.totalorder %s29, %s45
      %p47 = scmp.eq.s32.totalorder %s21, 0
      %p48 = por %p46, %p47
      %s50 = sadd.s32 %s49, 1
      %p53 = scmp.eq.s32.totalorder %s15, 1
      %p54 = scmp.ne.s32.totalorder %s49, %s51
      %p55 = scmp.eq.s32.totalorder %s15, 0
      %p56 = por %p54, %p55
      %p57 = scmp.ne.s32.totalorder %s49, %s51
      %p58 = scmp.eq.s32.totalorder %s20, 1
      %p59 = por %p57, %p58
      %p60 = scmp.ne.s32.totalorder %s51, %s52
      %p61 = scmp.eq.s32.totalorder %s20, 0
      %p62 = por %p60, %p61
      %p63 = scmp.ne.s32.totalorder %s51, %s52
      %p64 = scmp.eq.s32.totalorder %s21, 1
      %p65 = por %p63, %p64
      %p67 = scmp.ne.s32.totalorder %s52, %s66
      %p68 = scmp.eq.s32.totalorder %s21, 0
      %p69 = por %p67, %p68
      %s71 = sadd.s32 %s70, 1
      %p74 = scmp.eq.s32.totalorder %s15, 1
      %p75 = scmp.ne.s32.totalorder %s70, %s72
      %p76 = scmp.eq.s32.totalorder %s15, 0
      %p77 = por %p75, %p76
      %p78 = scmp.ne.s32.totalorder %s70, %s72
      %p79 = scmp.eq.s32.totalorder %s20, 1
      %p80 = por %p78, %p79
      %p81 = scmp.ne.s32.totalorder %s72, %s73
      %p82 = scmp.eq.s32.totalorder %s20, 0
      %p83 = por %p81, %p82
      %p84 = scmp.ne.s32.totalorder %s72, %s73
      %p85 = scmp.eq.s32.totalorder %s21, 1
      %p86 = por %p84, %p85
      %p88 = scmp.ne.s32.totalorder %s73, %s87
      %p89 = scmp.eq.s32.totalorder %s21, 0
      %p90 = por %p88, %p89
      %s91 = ssub.s32 %s15, %s22
      %p92 = scmp.eq.s32.totalorder %s91, 0
      %s94 = sadd.s32 %s93, 1
      %s95 = scalar_select %p92, %s93, %s94
      %p98 = pneg %p92
      %p99 = scmp.eq.s32.totalorder %s15, 1
      %p100 = por %p98, %p99
      %p101 = scmp.ne.s32.totalorder %s93, %s96
      %p102 = scmp.eq.s32.totalorder %s15, 0
      %p103 = por %p101, %p102
      %p104 = scmp.ne.s32.totalorder %s93, %s96
      %p105 = scmp.eq.s32.totalorder %s20, 1
      %p106 = por %p104, %p105
      %p107 = scmp.ne.s32.totalorder %s96, %s97
      %p108 = scmp.eq.s32.totalorder %s20, 0
      %p109 = por %p107, %p108
      %p110 = scmp.ne.s32.totalorder %s96, %s97
      %p111 = scmp.eq.s32.totalorder %s21, 1
      %p112 = por %p110, %p111
      %p114 = scmp.ne.s32.totalorder %s97, %s113
      %p115 = scmp.eq.s32.totalorder %s21, 0
      %p116 = por %p114, %p115
      %p117 = scmp.le.s32.totalorder 1, %s15
      %p118 = scmp.lt.s32.totalorder %s15, 3
      %p119 = pnand %p117, %p118
      %p120 = pneg %p119
      // Predicated region
      $region9: #{tpu_custom_call.1} parent=5 // pred_check
        _
      $region10: #{tpu_custom_call.1} parent=5 // pred_check_branch
        %122 = sbr.rel (%p119) target = $region12
      $region11: #{tpu_custom_call.1} parent=5 // pred_region
        %s123 = ssub.s32 %s15, 1
        // Predicated region
        $region13: #{tpu_custom_call.1} parent=11 // pred_check
          %p124 = pneg %p62
        $region14: #{tpu_custom_call.1} parent=11 // pred_check_branch
          %126 = sbr.rel (%p124) target = $region16
        $region15: #{tpu_custom_call.1} parent=11 // pred_region
          _
        $region16: #{tpu_custom_call.1} parent=11 // pred_fallthru
          _
        // Predicated region
        $region17: #{tpu_custom_call.1} parent=11 // pred_check
          %p127 = pneg %p83
        $region18: #{tpu_custom_call.1} parent=11 // pred_check_branch
          %129 = sbr.rel (%p127) target = $region20
        $region19: #{tpu_custom_call.1} parent=11 // pred_region
          _
        $region20: #{tpu_custom_call.1} parent=11 // pred_fallthru
          _
      $region12: #{tpu_custom_call.1} parent=5 // pred_fallthru
        _
      %p130 = scmp.lt.s32.totalorder %s15, 2
      // Predicated region
      $region21: #{tpu_custom_call.1} parent=5 // pred_check
        %p131 = pneg %p130
      $region22: #{tpu_custom_call.1} parent=5 // pred_check_branch
        %133 = sbr.rel (%p131) target = $region24
      $region23: #{tpu_custom_call.1} parent=5 // pred_region
        // Predicated region
        $region25: #{tpu_custom_call.1} parent=23 // pred_check
          %p134 = pneg %p35
        $region26: #{tpu_custom_call.1} parent=23 // pred_check_branch
          %136 = sbr.rel (%p134) target = $region28
        $region27: #{tpu_custom_call.1} parent=23 // pred_region
          %s137 = sand.u32 %s25, 1
          %s138 = scalar_lea.sflag [#allocation3], %s137
          %s139 = sand.u32 %s25, 1
          %s140 = smul.addr %s139, 64
          %s141 = scalar_lea.vmem [#allocation2], %s140
          %s143 = ssub.s32 1024, 1024
          %144 = vsyncadd %s138, %s143
          %s145 = smul.addr %s15, 8
          %s146 = smul.addr %s145, 128
          %s147 = scalar_lea.hbm %s0, %s146
          %s148 = sshll.u32 %s141, 4
          %s149 = int_to_ptr.vmem [resolvable:$true] %s148
          %154 = dma.hbm_to_vmem [thread:$0]  %s147, 1024, %s149, %s138, 256, 256, 16
        $region28: #{tpu_custom_call.1} parent=23 // pred_fallthru
          _
      $region24: #{tpu_custom_call.1} parent=5 // pred_fallthru
        _
      %p155 = scmp.le.s32.totalorder 1, %s15
      %p156 = scmp.lt.s32.totalorder %s15, 3
      %p157 = pnand %p155, %p156
      %p158 = pneg %p157
      // Predicated region
      $region29: #{tpu_custom_call.1} parent=5 // pred_check
        _
      $region30: #{tpu_custom_call.1} parent=5 // pred_check_branch
        %160 = sbr.rel (%p157) target = $region32
      $region31: #{tpu_custom_call.1} parent=5 // pred_region
        %s161 = ssub.s32 %s15, 1
        %s162 = sand.u32 %s28, 1
        %s163 = scalar_lea.sflag [#allocation3], %s162
        %s164 = sand.u32 %s28, 1
        %s165 = smul.addr %s164, 64
        %s166 = scalar_lea.vmem [#allocation2], %s165
        // Predicated region
        $region33: #{tpu_custom_call.1} parent=31 // pred_check
          %p167 = pneg %p41
        $region34: #{tpu_custom_call.1} parent=31 // pred_check_branch
          %169 = sbr.rel (%p167) target = $region36
        $region35: #{tpu_custom_call.1} parent=31 // pred_region
          %170 = dma.done %s163, 1024
        $region36: #{tpu_custom_call.1} parent=31 // pred_fallthru
          _
        %s171 = sand.u32 %s28, 1
        %s172 = scalar_lea.sflag [#allocation3], %s171
        %s173 = sand.u32 %s28, 1
        %s174 = smul.addr %s173, 64
        %s175 = scalar_lea.vmem [#allocation2], %s174
        %p176 = pneg %p41
        %p177 = pneg %p38
        %p178 = pneg %p62
        %p179 = pneg %p59
        %p180 = pneg %p83
        %p181 = pneg %p80
        %p182 = pneg %p109
        %p183 = pneg %p106
        %s184 = sand.u32 %s96, 1
        %s185 = scalar_lea.sflag [#allocation4], %s184
        %s186 = sand.u32 %s96, 1
        %s187 = smul.addr %s186, 64
        %s188 = scalar_lea.vmem [#allocation5], %s187
        %v189 = vld [vmem:[%s166] sm:$0xff]
        %v190 = vld [vmem:[%s166 + $0x8] sm:$0xff]
        %v191 = vld [vmem:[%s166 + $0x10] sm:$0xff]
        %v192 = vld [vmem:[%s166 + $0x18] sm:$0xff]
        %v193 = vld [vmem:[%s166 + $0x20] sm:$0xff]
        %v194 = vld [vmem:[%s166 + $0x28] sm:$0xff]
        %v195 = vld [vmem:[%s166 + $0x30] sm:$0xff]
        %v196 = vld [vmem:[%s166 + $0x38] sm:$0xff]
        %v197 = vadd.f32 %v189, %v190
        %198 = vadd.xlane.f32.xlu0 %v197
        %v199 = vpop.xlane.xlu0 %198
        %v200 = vadd.f32 %v191, %v192
        %201 = vadd.xlane.f32.xlu0 %v200
        %v202 = vpop.xlane.xlu0 %201
        %v203 = vadd.f32 %v193, %v194
        %204 = vadd.xlane.f32.xlu0 %v203
        %v205 = vpop.xlane.xlu0 %204
        %v206 = vadd.f32 %v195, %v196
        %207 = vadd.xlane.f32.xlu0 %v206
        %v208 = vpop.xlane.xlu0 %207
        %v209 = vmul.f32 %v199, 0.00390625
        %v210 = vmul.f32 %v202, 0.00390625
        %v211 = vmul.f32 %v205, 0.00390625
        %v212 = vmul.f32 %v208, 0.00390625
        %v213 = vld [vmem:[%s1] sm:$0xff]
        %v214 = vld [vmem:[%s1 + $0x8] sm:$0xff]
        %v215 = vld [vmem:[%s1 + $0x10] sm:$0xff]
        %v216 = vld [vmem:[%s1 + $0x18] sm:$0xff]
        %v217 = vld [vmem:[%s2] sm:$0xff]
        %v218 = vld [vmem:[%s2 + $0x8] sm:$0xff]
        %v219 = vld [vmem:[%s2 + $0x10] sm:$0xff]
        %v220 = vld [vmem:[%s2 + $0x18] sm:$0xff]
        %v221 = vmul.f32 %v209, %v213
        %v222 = vmul.f32 %v210, %v214
        %v223 = vmul.f32 %v211, %v215
        %v224 = vmul.f32 %v212, %v216
        %vm225 = vcmask 15360
        %v226 = vsel %vm225, %v221, 0.0
        %v227 = vsel %vm225, %v222, 0.0
        %v228 = vadd.f32 %v226, %v227
        %v229 = vsel %vm225, %v223, 0.0
        %v230 = vadd.f32 %v228, %v229
        %v231 = vsel %vm225, %v224, 0.0
        %v232 = vadd.f32 %v230, %v231
        %v233 = vrot.slane %v232, 4
        %v234 = vadd.f32 %v232, %v233
        %v235 = vrot.slane %v234, 2
        %v236 = vadd.f32 %v234, %v235
        %v237 = vrot.slane %v236, 1
        %v238 = vadd.f32 %v236, %v237
        %v239 = vmax.f32 %v238, 0.0
        %v240 = vmul.f32 %v239, %v217
        %v241 = vmul.f32 %v239, %v218
        %v242 = vmul.f32 %v239, %v219
        %v243 = vmul.f32 %v239, %v220
        %v244 = vsel %vm225, %v240, 0.0
        %245 = vadd.xlane.f32.xlu0 %v244
        %v246 = vpop.xlane.xlu0 %245
        %v247 = vsel %vm225, %v241, 0.0
        %248 = vadd.xlane.f32.xlu0 %v247
        %v249 = vpop.xlane.xlu0 %248
        %v250 = vsel %vm225, %v242, 0.0
        %251 = vadd.xlane.f32.xlu0 %v250
        %v252 = vpop.xlane.xlu0 %251
        %v253 = vsel %vm225, %v243, 0.0
        %254 = vadd.xlane.f32.xlu0 %v253
        %v255 = vpop.xlane.xlu0 %254
        %v256 = vsub.f32 0.0, %v246
        %v257 = vsub.f32 0.0, %v249
        %v258 = vsub.f32 0.0, %v252
        %v259 = vsub.f32 0.0, %v255
        %v260 = vmul.f32 %v256, 1.442695
        %v261 = vpow.pop %v260
        %v262 = vmul.f32 %v257, 1.442695
        %v263 = vpow.pop %v262
        %v264 = vmul.f32 %v258, 1.442695
        %v265 = vpow.pop %v264
        %v266 = vmul.f32 %v259, 1.442695
        %v267 = vpow.pop %v266
        %v268 = vadd.f32 %v261, 1.0
        %v269 = vadd.f32 %v263, 1.0
        %v270 = vadd.f32 %v265, 1.0
        %v271 = vadd.f32 %v267, 1.0
        %v272 = vrcp.pop %v268
        %v273 = vmul.f32 1.0, %v272
        %v274 = vrcp.pop %v269
        %v275 = vmul.f32 1.0, %v274
        %v276 = vrcp.pop %v270
        %v277 = vmul.f32 1.0, %v276
        %v278 = vrcp.pop %v271
        %v279 = vmul.f32 1.0, %v278
        %v280 = vmul.f32 %v189, %v273
        %v281 = vmul.f32 %v190, %v273
        %v282 = vmul.f32 %v191, %v275
        %v283 = vmul.f32 %v192, %v275
        %v284 = vmul.f32 %v193, %v277
        %v285 = vmul.f32 %v194, %v277
        %v286 = vmul.f32 %v195, %v279
        %v287 = vmul.f32 %v196, %v279
        %288 = vst [vmem:[%s188] sm:$0xff] %v280
        %289 = vst [vmem:[%s188 + $0x8] sm:$0xff] %v281
        %290 = vst [vmem:[%s188 + $0x10] sm:$0xff] %v282
        %291 = vst [vmem:[%s188 + $0x18] sm:$0xff] %v283
        %292 = vst [vmem:[%s188 + $0x20] sm:$0xff] %v284
        %293 = vst [vmem:[%s188 + $0x28] sm:$0xff] %v285
        %294 = vst [vmem:[%s188 + $0x30] sm:$0xff] %v286
        %295 = vst [vmem:[%s188 + $0x38] sm:$0xff] %v287
        %s296 = sand.u32 %s96, 1
        %s297 = scalar_lea.sflag [#allocation4], %s296
        %s298 = sand.u32 %s96, 1
        %s299 = smul.addr %s298, 64
        %s300 = scalar_lea.vmem [#allocation5], %s299
        // Predicated region
        $region37: #{tpu_custom_call.1} parent=31 // pred_check
          %p301 = pneg %p106
        $region38: #{tpu_custom_call.1} parent=31 // pred_check_branch
          %303 = sbr.rel (%p301) target = $region40
        $region39: #{tpu_custom_call.1} parent=31 // pred_region
          %s305 = ssub.s32 1024, 1024
          %306 = vsyncadd %s297, %s305
          %s307 = smul.addr %s20, 8
          %s308 = smul.addr %s307, 128
          %s309 = scalar_lea.hbm %s3, %s308
          %s310 = sshll.u32 %s300, 4
          %s311 = int_to_ptr.vmem [resolvable:$true] %s310
          %316 = dma.vmem_to_hbm [thread:$0]  %s311, 1024, %s309, %s297, 256, 256, 16
        $region40: #{tpu_custom_call.1} parent=31 // pred_fallthru
          _
      $region32: #{tpu_custom_call.1} parent=5 // pred_fallthru
        _
      %p317 = scmp.le.s32.totalorder 2, %s15
      // Predicated region
      $region41: #{tpu_custom_call.1} parent=5 // pred_check
        %p318 = pneg %p317
      $region42: #{tpu_custom_call.1} parent=5 // pred_check_branch
        %320 = sbr.rel (%p318) target = $region44
      $region43: #{tpu_custom_call.1} parent=5 // pred_region
        %s321 = ssub.s32 %s15, 2
        // Predicated region
        $region45: #{tpu_custom_call.1} parent=43 // pred_check
          %p322 = pneg %p112
        $region46: #{tpu_custom_call.1} parent=43 // pred_check_branch
          %324 = sbr.rel (%p322) target = $region48
        $region47: #{tpu_custom_call.1} parent=43 // pred_region
          %s325 = sand.u32 %s97, 1
          %s326 = scalar_lea.sflag [#allocation4], %s325
          %s327 = sand.u32 %s97, 1
          %s328 = smul.addr %s327, 64
          %s329 = scalar_lea.vmem [#allocation5], %s328
          %330 = dma.done %s326, 1024
        $region48: #{tpu_custom_call.1} parent=43 // pred_fallthru
          _
      $region44: #{tpu_custom_call.1} parent=5 // pred_fallthru
        _
    $region6: #{tpu_custom_call.1} parent=1 // loop_footer
      %s19 = sadd.s32 1, %s15
    $region7: #{tpu_custom_call.1} parent=1 // loop_footer_branch
      %14 = sbr.rel target = $region3
    $region8: #{tpu_custom_call.1} parent=1 // loop_exit
      _
    %331 = vsyncpa [#allocation3], 1
    %s332 = scalar_lea.sflag [#allocation3], 1
    %333 = vsyncpa %s332, 1
    %334 = vsyncpa [#allocation4], 1
    %s335 = scalar_lea.sflag [#allocation4], 1
    %336 = vsyncpa %s335, 1

</llo_original>
